<compile_context>
chip_gen: v6e
topology: v6e:2x2x1
jax: 0.10.0
libtpu: 0.0.40
codegen_flags: <defaults>
</compile_context>

<pallas_src>
import functools

import jax
import jax.numpy as jnp
from jax.experimental import pallas as pl
from jax.experimental.pallas import tpu as pltpu


def _config_encoder_kernel(x_ref, w1_ref, b1_ref, w2_ref, b2_ref, o_ref,
                           *, bf16_matmul: bool):
    # x_ref: [tm, K]   w1_ref: [K, E]   b1_ref: [1, E]
    # w2_ref: [E, E]   b2_ref: [1, E]   o_ref: [tm, E]
    x = x_ref[...].astype(jnp.float32)
    w1 = w1_ref[...].astype(jnp.float32)
    w2 = w2_ref[...]

    # Layer 1 on the MXU (K already padded to 8 in the wrapper); bias is free.
    h = jnp.dot(x, w1, preferred_element_type=jnp.float32)
    h = h + b1_ref[...].astype(jnp.float32)
    h = jnp.maximum(h, 0.0)                                 # ReLU in f32

    # Layer 2 on the MXU (E x E = 128 x 128), f32 accumulation.
    if bf16_matmul:
        # Single bf16 MXU pass; only use when the 1e-5 contract is relaxed.
        h = h.astype(jnp.bfloat16)
        w2 = w2.astype(jnp.bfloat16)
    y = jnp.dot(h, w2, preferred_element_type=jnp.float32)
    y = y + b2_ref[...].astype(jnp.float32)
    o_ref[...] = y.astype(o_ref.dtype)


def _round_up(n, m):
    return ((n + m - 1) // m) * m


@functools.partial(jax.jit, static_argnames=("block_b", "bf16_matmul"))
def config_encoder(x, w1, b1, w2, b2, *, block_b: int = 1024,
                   bf16_matmul: bool = False):
    """config x: [B, config_dim] -> embedding [B, embed_dim]."""
    B, C = x.shape
    E = w1.shape[1]
    K = _round_up(max(C, 1), 8)          # pad contraction dim 5 -> 8 for the MXU

    # Pad K once, in HBM-contiguous form (12 B/row extra, negligible traffic).
    if K != C:
        x = jnp.pad(x, ((0, 0), (0, K - C)))
        w1 = jnp.pad(w1, ((0, K - C), (0, 0)))
    b1_2d = b1.reshape(1, E)
    b2_2d = b2.reshape(1, E)

    # Balanced batch tiling:
    #  - at least 2 grid steps so both v7x TensorCores get work,
    #  - tm a multiple of 8 sublanes, capped at block_b,
    #  - padding bounded to <8 rows per tile (no round-up-to-tm blowup).
    block_b = max(8, _round_up(block_b, 8))
    n_tiles_target = max(pl.cdiv(B, block_b), 2)
    tm = max(8, min(block_b, _round_up(pl.cdiv(B, n_tiles_target), 8)))
    n_tiles = pl.cdiv(B, tm)
    B_pad = n_tiles * tm
    if B_pad != B:
        x = jnp.pad(x, ((0, B_pad - B), (0, 0)))

    grid = (n_tiles,)

    cost = pl.CostEstimate(
        flops=2 * B_pad * E * (K + E),
        transcendentals=0,
        bytes_accessed=(B_pad * K + K * E + E * E + 2 * E + B_pad * E) * 4,
    )

    out = pl.pallas_call(
        functools.partial(_config_encoder_kernel, bf16_matmul=bf16_matmul),
        out_shape=jax.ShapeDtypeStruct((B_pad, E), x.dtype),
        grid=grid,
        in_specs=[
            # x: one (tm, K) tile per grid step (K == full array dim -> legal).
            pl.BlockSpec((tm, K), lambda i: (i, 0)),
            # Weights / biases: grid-invariant -> fetched once, stay in VMEM.
            pl.BlockSpec((K, E), lambda i: (0, 0)),
            pl.BlockSpec((1, E), lambda i: (0, 0)),
            pl.BlockSpec((E, E), lambda i: (0, 0)),
            pl.BlockSpec((1, E), lambda i: (0, 0)),
        ],
        out_specs=pl.BlockSpec((tm, E), lambda i: (i, 0)),
        compiler_params=pltpu.CompilerParams(
            dimension_semantics=("parallel",),
        ),
        cost_estimate=cost,
    )(x, w1, b1_2d, w2, b2_2d)

    return out[:B] if B_pad != B else out


def init_params(key, config_dim=5, embed_dim=128, dtype=jnp.float32):
    """Deterministic init matching torch.nn.Linear's uniform(-1/sqrt(fan_in), +)."""
    k1, k2, k3, k4 = jax.random.split(key, 4)
    bound1 = 1.0 / jnp.sqrt(config_dim)
    bound2 = 1.0 / jnp.sqrt(embed_dim)
    w1 = jax.random.uniform(k1, (config_dim, embed_dim), dtype, -bound1, bound1)
    b1 = jax.random.uniform(k2, (embed_dim,), dtype, -bound1, bound1)
    w2 = jax.random.uniform(k3, (embed_dim, embed_dim), dtype, -bound2, bound2)
    b2 = jax.random.uniform(k4, (embed_dim,), dtype, -bound2, bound2)
    return w1, b1, w2, b2


def _reference(x, w1, b1, w2, b2):
    return jnp.maximum(x @ w1 + b1, 0.0) @ w2 + b2


if __name__ == "__main__":
    config_dim, embed_dim = 5, 128

    key = jax.random.PRNGKey(0)
    k_x, k_x2, k_x3, k_p = jax.random.split(key, 4)
    w1, b1, w2, b2 = init_params(k_p, config_dim, embed_dim)

    # Small batch (matches the module's typical usage).
    batch = 8
    x = jax.random.normal(k_x, (batch, config_dim), jnp.float32)
    out = jax.block_until_ready(config_encoder(x, w1, b1, w2, b2))
    ref = _reference(x, w1, b1, w2, b2)
    assert out.shape == (batch, embed_dim)
    assert jnp.allclose(out, ref, atol=1e-5, rtol=1e-5)

    # Ragged / multi-tile batch to exercise balanced tiling + the batch grid.
    batch2 = 200
    x2 = jax.random.normal(k_x2, (batch2, config_dim), jnp.float32)
    out2 = jax.block_until_ready(
        config_encoder(x2, w1, b1, w2, b2, block_b=64))
    ref2 = _reference(x2, w1, b1, w2, b2)
    assert out2.shape == (batch2, embed_dim)
    assert jnp.allclose(out2, ref2, atol=1e-5, rtol=1e-5)

    # Awkward batch size at the default tile (checks the balanced-padding path).
    batch3 = 520
    x3 = jax.random.normal(k_x3, (batch3, config_dim), jnp.float32)
    out3 = jax.block_until_ready(config_encoder(x3, w1, b1, w2, b2))
    ref3 = _reference(x3, w1, b1, w2, b2)
    assert out3.shape == (batch3, embed_dim)
    assert jnp.allclose(out3, ref3, atol=1e-5, rtol=1e-5)

    print("KERNEL_OK")
</pallas_src>

<mosaic_0001>
module attributes {stable_mosaic.version = 11 : i64} {
  func.func @_config_encoder_kernel(%arg0: i32, %arg1: memref<8x8xf32, #tpu.memory_space<vmem>>, %arg2: memref<8x128xf32, #tpu.memory_space<vmem>>, %arg3: memref<1x128xf32, #tpu.memory_space<vmem>>, %arg4: memref<128x128xf32, #tpu.memory_space<vmem>>, %arg5: memref<1x128xf32, #tpu.memory_space<vmem>>, %arg6: memref<8x128xf32, #tpu.memory_space<vmem>>) attributes {dimension_semantics = [#tpu.dimension_semantics<parallel>], iteration_bounds = array<i64: 1>, scalar_prefetch = 0 : i64, scratch_operands = 0 : i64, tpu.core_type = #tpu.core_type<tc>, window_params = [{transform_indices = @transform_0, window_bounds = array<i64: 8, 8>}, {pipeline_mode = #tpu.pipeline_mode<synchronous>, transform_indices = @transform_1, window_bounds = array<i64: 8, 128>}, {pipeline_mode = #tpu.pipeline_mode<synchronous>, transform_indices = @transform_2, window_bounds = array<i64: 1, 128>}, {pipeline_mode = #tpu.pipeline_mode<synchronous>, transform_indices = @transform_3, window_bounds = array<i64: 128, 128>}, {pipeline_mode = #tpu.pipeline_mode<synchronous>, transform_indices = @transform_4, window_bounds = array<i64: 1, 128>}, {transform_indices = @transform_5, window_bounds = array<i64: 8, 128>}]} {
    %c0 = arith.constant 0 : index
    %c0_0 = arith.constant 0 : index
    %0 = vector.load %arg1[%c0, %c0_0] : memref<8x8xf32, #tpu.memory_space<vmem>>, vector<8x8xf32>
    %c0_1 = arith.constant 0 : index
    %c0_2 = arith.constant 0 : index
    %1 = vector.load %arg2[%c0_1, %c0_2] : memref<8x128xf32, #tpu.memory_space<vmem>>, vector<8x128xf32>
    %c0_3 = arith.constant 0 : index
    %c0_4 = arith.constant 0 : index
    %2 = vector.load %arg4[%c0_3, %c0_4] : memref<128x128xf32, #tpu.memory_space<vmem>>, vector<128x128xf32>
    %cst = arith.constant dense<0.000000e+00> : vector<8x128xf32>
    %3 = tpu.matmul %0, %1, %cst {dimension_numbers = #tpu.dot_dimension_numbers<[1], [0], [0], [1], [0, 0, 1, 1], [], []>} : vector<8x8xf32>, vector<8x128xf32>, vector<8x128xf32> -> vector<8x128xf32>
    %c0_5 = arith.constant 0 : index
    %c0_6 = arith.constant 0 : index
    %4 = vector.load %arg3[%c0_5, %c0_6] : memref<1x128xf32, #tpu.memory_space<vmem>>, vector<1x128xf32>
    %5 = vector.broadcast %4 : vector<1x128xf32> to vector<8x128xf32>
    %6 = arith.addf %3, %5 : vector<8x128xf32>
    %cst_7 = arith.constant 0.000000e+00 : f32
    %7 = vector.broadcast %cst_7 : f32 to vector<8x128xf32>
    %8 = arith.maximumf %6, %7 : vector<8x128xf32>
    %cst_8 = arith.constant dense<0.000000e+00> : vector<8x128xf32>
    %9 = tpu.matmul %8, %2, %cst_8 {dimension_numbers = #tpu.dot_dimension_numbers<[1], [0], [0], [1], [0, 0, 1, 1], [], []>} : vector<8x128xf32>, vector<128x128xf32>, vector<8x128xf32> -> vector<8x128xf32>
    %c0_9 = arith.constant 0 : index
    %c0_10 = arith.constant 0 : index
    %10 = vector.load %arg5[%c0_9, %c0_10] : memref<1x128xf32, #tpu.memory_space<vmem>>, vector<1x128xf32>
    %11 = vector.broadcast %10 : vector<1x128xf32> to vector<8x128xf32>
    %12 = arith.addf %9, %11 : vector<8x128xf32>
    %c0_11 = arith.constant 0 : index
    %c0_12 = arith.constant 0 : index
    %13 = vector.load %arg6[%c0_11, %c0_12] : memref<8x128xf32, #tpu.memory_space<vmem>>, vector<8x128xf32>
    tpu.vector_store %arg6[%c0_11, %c0_12], %12 {strides = array<i32>} : memref<8x128xf32, #tpu.memory_space<vmem>>, vector<8x128xf32>,
    return
  }
  func.func @transform_0(%arg0: i32) -> (i32, i32) {
    %c0_i32 = arith.constant 0 : i32
    %c0_i32_0 = arith.constant 0 : i32
    return %arg0, %c0_i32 : i32, i32
  }
  func.func @transform_1(%arg0: i32) -> (i32, i32) {
    %c0_i32 = arith.constant 0 : i32
    %c0_i32_0 = arith.constant 0 : i32
    %c0_i32_1 = arith.constant 0 : i32
    return %c0_i32, %c0_i32_0 : i32, i32
  }
  func.func @transform_2(%arg0: i32) -> (i32, i32) {
    %c0_i32 = arith.constant 0 : i32
    %c0_i32_0 = arith.constant 0 : i32
    %c0_i32_1 = arith.constant 0 : i32
    return %c0_i32, %c0_i32_0 : i32, i32
  }
  func.func @transform_3(%arg0: i32) -> (i32, i32) {
    %c0_i32 = arith.constant 0 : i32
    %c0_i32_0 = arith.constant 0 : i32
    %c0_i32_1 = arith.constant 0 : i32
    return %c0_i32, %c0_i32_0 : i32, i32
  }
  func.func @transform_4(%arg0: i32) -> (i32, i32) {
    %c0_i32 = arith.constant 0 : i32
    %c0_i32_0 = arith.constant 0 : i32
    %c0_i32_1 = arith.constant 0 : i32
    return %c0_i32, %c0_i32_0 : i32, i32
  }
  func.func @transform_5(%arg0: i32) -> (i32, i32) {
    %c0_i32 = arith.constant 0 : i32
    %c0_i32_0 = arith.constant 0 : i32
    return %arg0, %c0_i32 : i32, i32
  }
}

</mosaic_0001>

<llo_original>
// kernel: config_encoder.1
$region0: #{config_encoder.1}
  #allocation0 [shape = 'u32[]', space=smem, size = 0x4, offset = 0x4, fixed_abs, tag = 'smem constant byte address 0x4 - core index']
  #allocation1 [shape = 'u32[144,128]{1,0:T(1,128)}', space=vmem, size = 0x12000, scoped, tag = 'internal scratch']
  %s0 = inlined_call_operand.vmem [shape: f32[8,8], index: 0, kind: input, shape index: {}]
  %s1 = inlined_call_operand.vmem [shape: f32[8,128], index: 1, kind: input, shape index: {}]
  %s2 = inlined_call_operand.vmem [shape: f32[1,128], index: 2, kind: input, shape index: {}]
  %s3 = inlined_call_operand.hbm [shape: f32[128,128], index: 3, kind: input, shape index: {}]
  %s4 = inlined_call_operand.vmem [shape: f32[1,128], index: 4, kind: input, shape index: {}]
  %s5 = inlined_call_operand.hbm [shape: f32[8,128], index: 5, kind: output, shape index: {}]
  %s6 = sld [smem:[#allocation0]]
  $region34: #{config_encoder.1} parent=0
    _
  %s8 = ssub.s32 1, %s6
  %s9 = scalar_select 0, %s8, %s6
  $region1: #{config_encoder.1} parent=0
    #allocation2 [shape = 'u8[65536]{0}', space=vmem, size = 0x10000, scoped, tag = 'input window, operand 3, single buffered']
    #allocation3 [shape = 's32[1]{0}', space=sflag, size = 0x4, scoped, tag = 'scoped memory for config_encoder.1']
    #allocation4 [shape = 's32[1]{0}', space=sflag, size = 0x4, scoped, tag = 'scoped memory for config_encoder.1']
    #allocation5 [shape = 'u8[4096]{0}', space=vmem, size = 0x1000, scoped, tag = 'output window, operand 0, single buffered']
    %10 = vsyncpa [#allocation3], 0
    %11 = vsyncpa [#allocation4], 0
    // Predicated region
    $region2: #{config_encoder.1} parent=1 // pred_check
      _
    $region3: #{config_encoder.1} parent=1 // pred_check_branch
      %13 = sbr.rel (0) target = $region5
    $region4: #{config_encoder.1} parent=1 // pred_region
      _
    $region5: #{config_encoder.1} parent=1 // pred_fallthru
      _
    // Predicated region
    $region6: #{config_encoder.1} parent=1 // pred_check
      _
    $region7: #{config_encoder.1} parent=1 // pred_check_branch
      %15 = sbr.rel (0) target = $region9
    $region8: #{config_encoder.1} parent=1 // pred_region
      _
    $region9: #{config_encoder.1} parent=1 // pred_fallthru
      _
    // Predicated region
    $region10: #{config_encoder.1} parent=1 // pred_check
      _
    $region11: #{config_encoder.1} parent=1 // pred_check_branch
      %17 = sbr.rel (0) target = $region13
    $region12: #{config_encoder.1} parent=1 // pred_region
      _
    $region13: #{config_encoder.1} parent=1 // pred_fallthru
      _
    // Predicated region
    $region14: #{config_encoder.1} parent=1 // pred_check
      _
    $region15: #{config_encoder.1} parent=1 // pred_check_branch
      %19 = sbr.rel (0) target = $region17
    $region16: #{config_encoder.1} parent=1 // pred_region
      %s21 = ssub.s32 2048, 2048
      %22 = vsyncadd [#allocation3], %s21
      %s23 = sshll.u32 [#allocation2], 4
      %s24 = int_to_ptr.vmem [resolvable:$true] %s23
      %29 = dma.hbm_to_vmem [thread:$0]  %s3, 2048, %s24, [#allocation3], 128, 128, 8
    $region17: #{config_encoder.1} parent=1 // pred_fallthru
      _
    // Predicated region
    $region18: #{config_encoder.1} parent=1 // pred_check
      _
    $region19: #{config_encoder.1} parent=1 // pred_check_branch
      %31 = sbr.rel (0) target = $region21
    $region20: #{config_encoder.1} parent=1 // pred_region
      _
    $region21: #{config_encoder.1} parent=1 // pred_fallthru
      _
    // Predicated region
    $region22: #{config_encoder.1} parent=1 // pred_check
      _
    $region23: #{config_encoder.1} parent=1 // pred_check_branch
      %33 = sbr.rel (0) target = $region25
    $region24: #{config_encoder.1} parent=1 // pred_region
      %34 = dma.done [#allocation3], 2048
    $region25: #{config_encoder.1} parent=1 // pred_fallthru
      _
    %v35 = vld [vmem:[%s0] sm:$0xff]
    %v36 = vld [vmem:[%s1] sm:$0xff]
    %v37 = vld [vmem:[#allocation2] sm:$0xff]
    %v38 = vld [vmem:[#allocation2 + $0x8] sm:$0xff]
    %v39 = vld [vmem:[#allocation2 + $0x10] sm:$0xff]
    %v40 = vld [vmem:[#allocation2 + $0x18] sm:$0xff]
    %v41 = vld [vmem:[#allocation2 + $0x20] sm:$0xff]
    %v42 = vld [vmem:[#allocation2 + $0x28] sm:$0xff]
    %v43 = vld [vmem:[#allocation2 + $0x30] sm:$0xff]
    %v44 = vld [vmem:[#allocation2 + $0x38] sm:$0xff]
    %v45 = vld [vmem:[#allocation2 + $0x40] sm:$0xff]
    %v46 = vld [vmem:[#allocation2 + $0x48] sm:$0xff]
    %v47 = vld [vmem:[#allocation2 + $0x50] sm:$0xff]
    %v48 = vld [vmem:[#allocation2 + $0x58] sm:$0xff]
    %v49 = vld [vmem:[#allocation2 + $0x60] sm:$0xff]
    %v50 = vld [vmem:[#allocation2 + $0x68] sm:$0xff]
    %v51 = vld [vmem:[#allocation2 + $0x70] sm:$0xff]
    %v52 = vld [vmem:[#allocation2 + $0x78] sm:$0xff]
    %v53 = vld [vmem:[%s2] sm:$0x1]
    %v55 = vlaneseq
    %v56 = vshrl.u32 %v55, 7
    %v57 = vsub.s32 0, %v56
    %v58 = vrot.slane %v53, %v57
    %vm60 = vcmask 64512
    %v62 = vsel %vm60, %v35, 0
    %64 = vmatprep.subr.mxu0 0.0
    %65 = vmatpush1.msra.mxu0 0.0
    %66 = vmatprep.subr.mxu0 0.0
    %67 = vmatpush1.msra.mxu0 0.0
    %68 = vmatprep.subr.mxu0 0.0
    %69 = vmatpush1.msra.mxu0 0.0
    %70 = vmatprep.subr.mxu0 0.0
    %71 = vmatpush1.msra.mxu0 0.0
    %72 = vmatprep.subr.mxu0 0.0
    %73 = vmatpush1.msra.mxu0 0.0
    %74 = vmatprep.subr.mxu0 0.0
    %75 = vmatpush1.msra.mxu0 0.0
    %76 = vmatprep.subr.mxu0 0.0
    %77 = vmatpush1.msra.mxu0 0.0
    %78 = vmatprep.subr.mxu0 0.0
    %79 = vmatpush1.msra.mxu0 0.0
    %80 = vmatprep.subr.mxu0 0.0
    %81 = vmatpush1.msra.mxu0 0.0
    %82 = vmatprep.subr.mxu0 0.0
    %83 = vmatpush1.msra.mxu0 0.0
    %84 = vmatprep.subr.mxu0 0.0
    %85 = vmatpush1.msra.mxu0 0.0
    %86 = vmatprep.subr.mxu0 0.0
    %87 = vmatpush1.msra.mxu0 0.0
    %88 = vmatprep.subr.mxu0 0.0
    %89 = vmatpush1.msra.mxu0 0.0
    %90 = vmatprep.subr.mxu0 0.0
    %91 = vmatpush1.msra.mxu0 0.0
    %92 = vmatprep.subr.mxu0 0.0
    %93 = vmatpush1.msra.mxu0 0.0
    %94 = vmatprep.subr.mxu0 0.0
    %95 = vmatpush1.msra.mxu0 %v36
    %96 = vmatprep.subr.mxu0 0.0
    %97 = vmatpush2.msra.mxu0 0.0
    %98 = vmatprep.subr.mxu0 0.0
    %99 = vmatpush2.msra.mxu0 0.0
    %100 = vmatprep.subr.mxu0 0.0
    %101 = vmatpush2.msra.mxu0 0.0
    %102 = vmatprep.subr.mxu0 0.0
    %103 = vmatpush2.msra.mxu0 0.0
    %104 = vmatprep.subr.mxu0 0.0
    %105 = vmatpush2.msra.mxu0 0.0
    %106 = vmatprep.subr.mxu0 0.0
    %107 = vmatpush2.msra.mxu0 0.0
    %108 = vmatprep.subr.mxu0 0.0
    %109 = vmatpush2.msra.mxu0 0.0
    %110 = vmatprep.subr.mxu0 0.0
    %111 = vmatpush2.msra.mxu0 0.0
    %112 = vmatprep.subr.mxu0 0.0
    %113 = vmatpush2.msra.mxu0 0.0
    %114 = vmatprep.subr.mxu0 0.0
    %115 = vmatpush2.msra.mxu0 0.0
    %116 = vmatprep.subr.mxu0 0.0
    %117 = vmatpush2.msra.mxu0 0.0
    %118 = vmatprep.subr.mxu0 0.0
    %119 = vmatpush2.msra.mxu0 0.0
    %120 = vmatprep.subr.mxu0 0.0
    %121 = vmatpush2.msra.mxu0 0.0
    %122 = vmatprep.subr.mxu0 0.0
    %123 = vmatpush2.msra.mxu0 0.0
    %124 = vmatprep.subr.mxu0 0.0
    %125 = vmatpush2.msra.mxu0 0.0
    %126 = vmatprep.subr.mxu0 0.0
    %127 = vmatpush2.msra.mxu0 0.0
    %128 = vmatprep.mubr.f32.mxu0 0.0
    %129 = vmatmul.mubr.f32.gmra.mxu0 %v62
    %v130 = vpop.f32.mrf.mxu0
    %v131 = vadd.f32 %v58, %v130
    %v132 = vpop.f32.mrf.mxu0
    %133 = vdwg.mxu0
    %v134 = vmax.f32 %v131, 0.0
    %v135 = vld [vmem:[%s4] sm:$0x1]
    %v137 = vlaneseq
    %v138 = vshrl.u32 %v137, 7
    %v139 = vsub.s32 0, %v138
    %v140 = vrot.slane %v135, %v139
    %142 = vmatprep.subr.mxu0 0.0
    %143 = vmatpush1.msra.mxu0 %v52
    %144 = vmatprep.subr.mxu0 0.0
    %145 = vmatpush1.msra.mxu0 %v51
    %146 = vmatprep.subr.mxu0 0.0
    %147 = vmatpush1.msra.mxu0 %v50
    %148 = vmatprep.subr.mxu0 0.0
    %149 = vmatpush1.msra.mxu0 %v49
    %150 = vmatprep.subr.mxu0 0.0
    %151 = vmatpush1.msra.mxu0 %v48
    %152 = vmatprep.subr.mxu0 0.0
    %153 = vmatpush1.msra.mxu0 %v47
    %154 = vmatprep.subr.mxu0 0.0
    %155 = vmatpush1.msra.mxu0 %v46
    %156 = vmatprep.subr.mxu0 0.0
    %157 = vmatpush1.msra.mxu0 %v45
    %158 = vmatprep.subr.mxu0 0.0
    %159 = vmatpush1.msra.mxu0 %v44
    %160 = vmatprep.subr.mxu0 0.0
    %161 = vmatpush1.msra.mxu0 %v43
    %162 = vmatprep.subr.mxu0 0.0
    %163 = vmatpush1.msra.mxu0 %v42
    %164 = vmatprep.subr.mxu0 0.0
    %165 = vmatpush1.msra.mxu0 %v41
    %166 = vmatprep.subr.mxu0 0.0
    %167 = vmatpush1.msra.mxu0 %v40
    %168 = vmatprep.subr.mxu0 0.0
    %169 = vmatpush1.msra.mxu0 %v39
    %170 = vmatprep.subr.mxu0 0.0
    %171 = vmatpush1.msra.mxu0 %v38
    %172 = vmatprep.subr.mxu0 0.0
    %173 = vmatpush1.msra.mxu0 %v37
    %174 = vmatprep.subr.mxu0 0.0
    %175 = vmatpush2.msra.mxu0 0.0
    %176 = vmatprep.subr.mxu0 0.0
    %177 = vmatpush2.msra.mxu0 0.0
    %178 = vmatprep.subr.mxu0 0.0
    %179 = vmatpush2.msra.mxu0 0.0
    %180 = vmatprep.subr.mxu0 0.0
    %181 = vmatpush2.msra.mxu0 0.0
    %182 = vmatprep.subr.mxu0 0.0
    %183 = vmatpush2.msra.mxu0 0.0
    %184 = vmatprep.subr.mxu0 0.0
    %185 = vmatpush2.msra.mxu0 0.0
    %186 = vmatprep.subr.mxu0 0.0
    %187 = vmatpush2.msra.mxu0 0.0
    %188 = vmatprep.subr.mxu0 0.0
    %189 = vmatpush2.msra.mxu0 0.0
    %190 = vmatprep.subr.mxu0 0.0
    %191 = vmatpush2.msra.mxu0 0.0
    %192 = vmatprep.subr.mxu0 0.0
    %193 = vmatpush2.msra.mxu0 0.0
    %194 = vmatprep.subr.mxu0 0.0
    %195 = vmatpush2.msra.mxu0 0.0
    %196 = vmatprep.subr.mxu0 0.0
    %197 = vmatpush2.msra.mxu0 0.0
    %198 = vmatprep.subr.mxu0 0.0
    %199 = vmatpush2.msra.mxu0 0.0
    %200 = vmatprep.subr.mxu0 0.0
    %201 = vmatpush2.msra.mxu0 0.0
    %202 = vmatprep.subr.mxu0 0.0
    %203 = vmatpush2.msra.mxu0 0.0
    %204 = vmatprep.subr.mxu0 0.0
    %205 = vmatpush2.msra.mxu0 0.0
    %206 = vmatprep.mubr.f32.mxu0 0.0
    %207 = vmatmul.mubr.f32.gmra.mxu0 %v134
    %v208 = vpop.f32.mrf.mxu0
    %v209 = vadd.f32 %v140, %v208
    %v210 = vpop.f32.mrf.mxu0
    %211 = vdwg.mxu0
    %212 = vst [vmem:[#allocation5] sm:$0xff] %v209
    // Predicated region
    $region26: #{config_encoder.1} parent=1 // pred_check
      _
    $region27: #{config_encoder.1} parent=1 // pred_check_branch
      %214 = sbr.rel (0) target = $region29
    $region28: #{config_encoder.1} parent=1 // pred_region
      %s216 = ssub.s32 128, 128
      %217 = vsyncadd [#allocation4], %s216
      %s219 = sshll.u32 [#allocation5], 4
      %s220 = int_to_ptr.vmem [resolvable:$true] %s219
      %222 = dma.vmem_to_hbm [thread:$0]  %s220, 128, %s5, [#allocation4]
    $region29: #{config_encoder.1} parent=1 // pred_fallthru
      _
    // Predicated region
    $region30: #{config_encoder.1} parent=1 // pred_check
      _
    $region31: #{config_encoder.1} parent=1 // pred_check_branch
      %224 = sbr.rel (0) target = $region33
    $region32: #{config_encoder.1} parent=1 // pred_region
      %225 = dma.done [#allocation4], 128
    $region33: #{config_encoder.1} parent=1 // pred_fallthru
      _
    %226 = vsyncpa [#allocation3], 1
    %227 = vsyncpa [#allocation4], 1

</llo_original>
